<compile_context>
chip_gen: v6e
topology: v6e:2x2x1
jax: 0.10.0
libtpu: 0.0.40
codegen_flags: <defaults>
</compile_context>

<pallas_src>
import math
from functools import partial

import jax
import jax.numpy as jnp
from jax import lax
from jax.experimental import pallas as pl
from jax.experimental.pallas import tpu as pltpu


def _round_up(x, m):
    return ((x + m - 1) // m) * m


def _cdiv(a, b):
    return (a + b - 1) // b


def _device_kind():
    try:
        return jax.devices()[0].device_kind.lower()
    except Exception:
        return ""


def _vmem_budget_bytes():
    """Generation-aware VMEM budget (v7x: 64 MiB/TC, v5e/v6e: 128 MiB)."""
    try:
        cap = int(pltpu.get_tpu_info().vmem_capacity_bytes)
    except Exception:
        cap = 64 << 20  # conservative (v7x per-TensorCore VMEM)
    return max(32 << 20, (cap * 3) // 4)


def _working_set_bytes(tm, tn, tk, csize, osize, use_scratch, w_bufs):
    return (2 * tm * tk * csize            # x, double-buffered
            + w_bufs * tk * tn * csize     # weight panel
            + 2 * tn * 4                   # bias
            + 2 * tm * tn * osize          # output
            + (tm * tn * 4 if use_scratch else 0))


def _weight_block_spec(block_shape, index_map, extra_buffering):
    if extra_buffering:
        # v5e: lowest HBM bandwidth -> 3-deep weight-panel buffering.
        try:
            return pl.BlockSpec(block_shape, index_map,
                                pipeline_mode=pl.Buffered(3))
        except TypeError:
            pass
    return pl.BlockSpec(block_shape, index_map)


# --------------------------------------------------------------------------
# Kernels
# --------------------------------------------------------------------------
def _projection_kernel_acc(precision, x_ref, w_ref, b_ref, o_ref, acc_ref):
    """y = x @ w + b with an f32 VMEM accumulator (narrow output dtypes)."""
    k = pl.program_id(2)

    @pl.when(k == 0)
    def _():
        # Seed the accumulator with the bias -> no epilogue add.
        acc_ref[...] = jnp.broadcast_to(
            b_ref[...].astype(jnp.float32), acc_ref.shape)

    a = x_ref[...]
    w = w_ref[...]
    if a.dtype != w.dtype:        # defensive; wrapper normally pre-casts x
        a = a.astype(w.dtype)
    acc_ref[...] += jnp.dot(a, w, preferred_element_type=jnp.float32,
                            precision=precision)

    @pl.when(k == pl.num_programs(2) - 1)
    def _():
        o_ref[...] = acc_ref[...].astype(o_ref.dtype)


def _projection_kernel_f32out(precision, x_ref, w_ref, b_ref, o_ref):
    """f32 output: accumulate straight into the resident output block."""
    k = pl.program_id(2)

    @pl.when(k == 0)
    def _():
        o_ref[...] = jnp.broadcast_to(
            b_ref[...].astype(jnp.float32), o_ref.shape)

    a = x_ref[...]
    w = w_ref[...]
    if a.dtype != w.dtype:
        a = a.astype(w.dtype)
    o_ref[...] += jnp.dot(a, w, preferred_element_type=jnp.float32,
                          precision=precision)


# --------------------------------------------------------------------------
# Wrapper
# --------------------------------------------------------------------------
def projection_layer(student_tensor, weight_kn, bias, *,
                     out_features=None, out_dtype=None,
                     tm=512, tn=1024, tk=2048, precision=None):
    """y = x @ W + b with a tiled Pallas MXU kernel.

    student_tensor: (..., K).
    weight_kn: (Kw, Nw) pre-transposed, optionally zero-padded to 128
        multiples, stored in the compute dtype (see make_projection_params).
    bias: (Nw,) or (1, Nw).
    out_features: true teacher hidden size N (defaults to weight_kn.shape[1]).
    """
    orig_shape = student_tensor.shape
    K = orig_shape[-1]
    Kw, Nw = weight_kn.shape
    N = out_features if out_features is not None else Nw
    assert Kw >= K and Nw >= N, (weight_kn.shape, K, N)

    out_dtype = jnp.dtype(out_dtype or student_tensor.dtype)
    compute_dtype = weight_kn.dtype
    if precision is None and jnp.dtype(compute_dtype) == jnp.dtype(jnp.float32):
        # True f32 path: default MXU precision would silently be a bf16 pass.
        precision = lax.Precision.HIGHEST

    x2d = student_tensor.reshape(-1, K)
    M = x2d.shape[0]
    if x2d.dtype != compute_dtype:
        x2d = x2d.astype(compute_dtype)   # no-op in the usual bf16 flow

    kind = _device_kind()
    is_v7 = "v7" in kind
    is_v5 = "v5" in kind

    csize = jnp.dtype(compute_dtype).itemsize
    osize = out_dtype.itemsize
    use_scratch = out_dtype != jnp.dtype(jnp.float32)
    m_sub = 16 if csize < 4 else 8                     # bf16 sublane packing
    lane_align = 128 if (is_v5 or N < 256) else 256    # MXU panel alignment

    # ---- tile selection -------------------------------------------------
    tm = min(tm, _round_up(M, m_sub))
    tn = min(tn, _round_up(N, lane_align))

    Kp = _round_up(Kw, 128)
    q = Kp // 128
    d = max(1, min(tk, Kp) // 128)
    while q % d:                 # largest 128-multiple divisor of Kp <= tk
        d -= 1
    tk = d * 128

    budget = _vmem_budget_bytes()
    w_bufs = 3 if is_v5 else 2
    while _working_set_bytes(tm, tn, tk, csize, osize, use_scratch,
                             w_bufs) > budget:
        if tn > 256 and tn >= tm:
            tn //= 2
        elif tm > 2 * m_sub:
            tm = max(m_sub, _round_up(tm // 2, 8))
        elif tn > 128:
            tn //= 2
        else:
            break

    # v7x has 2 TensorCores: make sure the "parallel" axes have >= 2 blocks.
    if is_v7 and _cdiv(M, tm) * _cdiv(N, tn) < 2:
        if tn >= 256:
            tn //= 2
        elif tm >= 2 * m_sub:
            tm = max(m_sub, _round_up(tm // 2, 8))

    # ---- only the K (reduction) tail ever needs explicit zero padding ----
    if Kp != Kw:                                            # rare
        weight_kn = jnp.pad(weight_kn, ((0, Kp - Kw), (0, 0)))
    if K != Kp:                                             # rare (K % 128)
        x2d = jnp.pad(x2d, ((0, 0), (0, Kp - K)))
    bias2d = bias.reshape(1, -1)

    grid = (_cdiv(M, tm), _cdiv(N, tn), Kp // tk)
    extra_buffering = is_v5 and (grid[1] * grid[2] >= 3)

    x_spec = pl.BlockSpec((tm, tk), lambda i, j, k: (i, k))
    w_spec = _weight_block_spec((tk, tn), lambda i, j, k: (k, j),
                                extra_buffering)
    b_spec = pl.BlockSpec((1, tn), lambda i, j, k: (0, j))
    o_spec = pl.BlockSpec((tm, tn), lambda i, j, k: (i, j))

    if use_scratch:
        kernel = partial(_projection_kernel_acc, precision)
        scratch = [pltpu.VMEM((tm, tn), jnp.float32)]
    else:
        kernel = partial(_projection_kernel_f32out, precision)
        scratch = []

    ws = _working_set_bytes(tm, tn, tk, csize, osize, use_scratch, w_bufs)
    vmem_limit = int(min(budget, max(2 * ws, 32 << 20)))

    cost = pl.CostEstimate(
        flops=2 * M * N * Kp,
        transcendentals=0,
        bytes_accessed=(M * Kp * csize + Kp * Nw * csize
                        + Nw * 4 + M * N * osize),
    )

    out = pl.pallas_call(
        kernel,
        out_shape=jax.ShapeDtypeStruct((M, N), out_dtype),
        grid_spec=pltpu.PrefetchScalarGridSpec(
            num_scalar_prefetch=0,
            grid=grid,
            in_specs=[x_spec, w_spec, b_spec],
            out_specs=o_spec,
            scratch_shapes=scratch,
        ),
        compiler_params=pltpu.CompilerParams(
            dimension_semantics=("parallel", "parallel", "arbitrary"),
            vmem_limit_bytes=vmem_limit,
        ),
        cost_estimate=cost,
    )(x2d, weight_kn, bias2d)

    return out.reshape(*orig_shape[:-1], N)


def make_projection_params(hidden_size_student, hidden_size_teacher, key, *,
                           param_dtype=jnp.bfloat16):
    """MXU-ready params, built once at init (nn.Linear + _init_weights).

    W ~ N(0, 0.01), b = 0.  The weight is stored pre-transposed as
    (K, N) = (student, teacher), zero-padded to 128 multiples and cast to the
    compute dtype HERE so the forward pass never re-casts / re-pads it.
    """
    K, N = hidden_size_student, hidden_size_teacher
    Kp, Np = _round_up(K, 128), _round_up(N, 128)
    w = 0.01 * jax.random.normal(key, (K, N), dtype=jnp.float32)
    w_kn = jnp.pad(w, ((0, Kp - K), (0, Np - N))).astype(param_dtype)
    b = jnp.zeros((1, Np), dtype=jnp.float32)
    return {"weight_kn": w_kn, "bias": b,
            "in_features": K, "out_features": N}


def projection_forward(student_tensor, hidden_size_student,
                       hidden_size_teacher, params=None, *, use_pallas=None):
    """Identity when sizes match, else the Linear projection."""
    if hidden_size_student == hidden_size_teacher:
        return student_tensor                          # nn.Identity branch
    w_kn, b = params["weight_kn"], params["bias"]
    K, N = params["in_features"], params["out_features"]
    if use_pallas is None:
        macs = math.prod(student_tensor.shape[:-1]) * K * N
        kind = _device_kind()
        # v6e/v7x MXUs (~5x v5e) move the Pallas-vs-XLA crossover out.
        cutoff = (1 << 25) if ("v6" in kind or "v7" in kind) else (1 << 22)
        use_pallas = macs >= cutoff
    if not use_pallas:
        x2d = student_tensor.reshape(-1, K)
        y = (x2d @ w_kn[:K, :N].astype(student_tensor.dtype)
             + b[0, :N].astype(student_tensor.dtype))
        return y.reshape(*student_tensor.shape[:-1], N).astype(
            student_tensor.dtype)
    return projection_layer(student_tensor, w_kn, b, out_features=N)


if __name__ == "__main__":
    # Small shapes: seq=8, batch=2, hidden_student=32, hidden_teacher=64.
    seq, batch = 8, 2
    hidden_student, hidden_teacher = 32, 64

    key = jax.random.PRNGKey(0)
    kx, kw, kb = jax.random.split(key, 3)

    x = jax.random.normal(kx, (seq, batch, hidden_student), dtype=jnp.float32)

    # f32 params -> exact-precision path (lax.Precision.HIGHEST).
    p32 = make_projection_params(hidden_student, hidden_teacher, kw,
                                 param_dtype=jnp.float32)
    # Non-zero bias so the bias-in-accumulator path is actually exercised.
    b_true = 0.1 * jax.random.normal(kb, (hidden_teacher,), dtype=jnp.float32)
    p32["bias"] = p32["bias"].at[0, :hidden_teacher].set(b_true)

    w_true = p32["weight_kn"][:hidden_student, :hidden_teacher]
    y_ref = (jnp.dot(x.reshape(-1, hidden_student), w_true,
                     precision=lax.Precision.HIGHEST)
             + b_true).reshape(seq, batch, hidden_teacher)

    y32 = jax.block_until_ready(
        projection_layer(x, p32["weight_kn"], p32["bias"],
                         out_features=hidden_teacher))
    assert y32.shape == (seq, batch, hidden_teacher)
    assert jnp.allclose(y32, y_ref, atol=1e-4, rtol=1e-4), (
        float(jnp.max(jnp.abs(y32 - y_ref))))

    # Default bf16 MXU path (weight cast + padded once, i.e. at "init").
    pbf = dict(p32)
    pbf["weight_kn"] = p32["weight_kn"].astype(jnp.bfloat16)
    y_ref_bf = (jnp.dot(x.reshape(-1, hidden_student),
                        pbf["weight_kn"][:hidden_student, :hidden_teacher]
                        .astype(jnp.float32),
                        precision=lax.Precision.HIGHEST)
                + b_true).reshape(seq, batch, hidden_teacher)
    ybf = jax.block_until_ready(
        projection_layer(x, pbf["weight_kn"], pbf["bias"],
                         out_features=hidden_teacher))
    assert jnp.allclose(ybf.astype(jnp.float32), y_ref_bf,
                        atol=1e-2, rtol=5e-2), (
        float(jnp.max(jnp.abs(ybf.astype(jnp.float32) - y_ref_bf))))

    # bf16 output -> exercises the f32-scratch accumulator variant.
    ybf16 = jax.block_until_ready(
        projection_layer(x, pbf["weight_kn"], pbf["bias"],
                         out_features=hidden_teacher, out_dtype=jnp.bfloat16))
    assert ybf16.dtype == jnp.bfloat16
    assert jnp.allclose(ybf16.astype(jnp.float32), y_ref_bf,
                        atol=5e-2, rtol=5e-2)

    # Identity branch.
    y_id = projection_forward(x, hidden_student, hidden_student)
    assert jnp.array_equal(jax.block_until_ready(y_id), x)

    # Auto-dispatch: tiny problem routes to XLA's fused dot.
    y_auto = jax.block_until_ready(
        projection_forward(x, hidden_student, hidden_teacher, pbf))
    assert y_auto.shape == (seq, batch, hidden_teacher)

    print("KERNEL_OK")
</pallas_src>

<mosaic_0001>
module attributes {stable_mosaic.version = 11 : i64} {
  func.func @_projection_kernel_f32out(%arg0: i32, %arg1: i32, %arg2: i32, %arg3: memref<16x128xf32, #tpu.memory_space<vmem>>, %arg4: memref<128x128xf32, #tpu.memory_space<vmem>>, %arg5: memref<1x128xf32, #tpu.memory_space<vmem>>, %arg6: memref<16x128xf32, #tpu.memory_space<vmem>>) attributes {dimension_semantics = [#tpu.dimension_semantics<parallel>, #tpu.dimension_semantics<parallel>, #tpu.dimension_semantics<arbitrary>], iteration_bounds = array<i64: 1, 1, 1>, scalar_prefetch = 0 : i64, scratch_operands = 0 : i64, tpu.core_type = #tpu.core_type<tc>, window_params = [{transform_indices = @transform_0, window_bounds = array<i64: 16, 128>}, {transform_indices = @transform_1, window_bounds = array<i64: 128, 128>}, {transform_indices = @transform_2, window_bounds = array<i64: 1, 128>}, {transform_indices = @transform_3, window_bounds = array<i64: 16, 128>}]} {
    %c0_i32 = arith.constant 0 : i32
    %0 = arith.cmpi eq, %arg2, %c0_i32 : i32
    %1 = arith.extui %0 : i1 to i32
    %c0_i32_0 = arith.constant 0 : i32
    %2 = arith.cmpi ne, %1, %c0_i32_0 : i32
    scf.if %2 {
      %c0_8 = arith.constant 0 : index
      %c0_9 = arith.constant 0 : index
      %9 = vector.load %arg5[%c0_8, %c0_9] : memref<1x128xf32, #tpu.memory_space<vmem>>, vector<1x128xf32>
      %10 = vector.shape_cast %9 : vector<1x128xf32> to vector<1x128xf32>
      %11 = vector.broadcast %10 : vector<1x128xf32> to vector<16x128xf32>
      %c0_10 = arith.constant 0 : index
      %c0_11 = arith.constant 0 : index
      %12 = vector.load %arg6[%c0_10, %c0_11] : memref<16x128xf32, #tpu.memory_space<vmem>>, vector<16x128xf32>
      tpu.vector_store %arg6[%c0_10, %c0_11], %11 {strides = array<i32>} : memref<16x128xf32, #tpu.memory_space<vmem>>, vector<16x128xf32>,
    } else {
    }
    %c0 = arith.constant 0 : index
    %c0_1 = arith.constant 0 : index
    %3 = vector.load %arg3[%c0, %c0_1] : memref<16x128xf32, #tpu.memory_space<vmem>>, vector<16x128xf32>
    %c0_2 = arith.constant 0 : index
    %c0_3 = arith.constant 0 : index
    %4 = vector.load %arg4[%c0_2, %c0_3] : memref<128x128xf32, #tpu.memory_space<vmem>>, vector<128x128xf32>
    %c0_4 = arith.constant 0 : index
    %c0_5 = arith.constant 0 : index
    %5 = vector.load %arg6[%c0_4, %c0_5] : memref<16x128xf32, #tpu.memory_space<vmem>>, vector<16x128xf32>
    %cst = arith.constant dense<0.000000e+00> : vector<16x128xf32>
    %6 = tpu.matmul %3, %4, %cst {dimension_numbers = #tpu.dot_dimension_numbers<[1], [0], [0], [1], [0, 0, 1, 1], [], []>, precision = #tpu.contract_precision<fp32>} : vector<16x128xf32>, vector<128x128xf32>, vector<16x128xf32> -> vector<16x128xf32>
    %7 = arith.addf %5, %6 : vector<16x128xf32>
    %c0_6 = arith.constant 0 : index
    %c0_7 = arith.constant 0 : index
    %8 = vector.load %arg6[%c0_6, %c0_7] : memref<16x128xf32, #tpu.memory_space<vmem>>, vector<16x128xf32>
    tpu.vector_store %arg6[%c0_6, %c0_7], %7 {strides = array<i32>} : memref<16x128xf32, #tpu.memory_space<vmem>>, vector<16x128xf32>,
    return
  }
  func.func @transform_0(%arg0: i32, %arg1: i32, %arg2: i32) -> (i32, i32) {
    %c0_i32 = arith.constant 0 : i32
    return %arg0, %arg2 : i32, i32
  }
  func.func @transform_1(%arg0: i32, %arg1: i32, %arg2: i32) -> (i32, i32) {
    %c0_i32 = arith.constant 0 : i32
    return %arg2, %arg1 : i32, i32
  }
  func.func @transform_2(%arg0: i32, %arg1: i32, %arg2: i32) -> (i32, i32) {
    %c0_i32 = arith.constant 0 : i32
    %c0_i32_0 = arith.constant 0 : i32
    return %c0_i32, %arg1 : i32, i32
  }
  func.func @transform_3(%arg0: i32, %arg1: i32, %arg2: i32) -> (i32, i32) {
    %c0_i32 = arith.constant 0 : i32
    return %arg0, %arg1 : i32, i32
  }
}

</mosaic_0001>

<llo_original>
// kernel: tpu_custom_call.1
$region0: #{tpu_custom_call.1}
  #allocation0 [shape = 'u32[]', space=smem, size = 0x4, offset = 0x4, fixed_abs, tag = 'smem constant byte address 0x4 - core index']
  #allocation1 [shape = 'u32[144,128]{1,0:T(1,128)}', space=vmem, size = 0x12000, scoped, tag = 'internal scratch']
  %s0 = inlined_call_operand.hbm [shape: f32[16,128], index: 0, kind: input, shape index: {}]
  %s1 = inlined_call_operand.hbm [shape: f32[128,128], index: 1, kind: input, shape index: {}]
  %s2 = inlined_call_operand.vmem [shape: f32[1,128], index: 2, kind: input, shape index: {}]
  %s3 = inlined_call_operand.hbm [shape: f32[16,64], index: 3, kind: output, shape index: {}]
  %s4 = sld [smem:[#allocation0]]
  $region34: #{tpu_custom_call.1} parent=0
    _
  %s6 = ssub.s32 1, %s4
  %s7 = scalar_select 0, %s6, %s4
  $region1: #{tpu_custom_call.1} parent=0
    #allocation2 [shape = 'u8[8192]{0}', space=vmem, size = 0x2000, scoped, tag = 'input window, operand 0, single buffered']
    #allocation3 [shape = 's32[1]{0}', space=sflag, size = 0x4, scoped, tag = 'scoped memory for tpu_custom_call.1']
    #allocation4 [shape = 's32[1]{0}', space=sflag, size = 0x4, scoped, tag = 'scoped memory for tpu_custom_call.1']
    #allocation5 [shape = 'u8[65536]{0}', space=vmem, size = 0x10000, scoped, tag = 'input window, operand 1, single buffered']
    #allocation6 [shape = 's32[1]{0}', space=sflag, size = 0x4, scoped, tag = 'scoped memory for tpu_custom_call.1']
    #allocation7 [shape = 'u8[8192]{0}', space=vmem, size = 0x2000, scoped, tag = 'output window, operand 0, single buffered']
    %8 = vsyncpa [#allocation3], 0
    %9 = vsyncpa [#allocation6], 0
    %10 = vsyncpa [#allocation4], 0
    // Predicated region
    $region2: #{tpu_custom_call.1} parent=1 // pred_check
      _
    $region3: #{tpu_custom_call.1} parent=1 // pred_check_branch
      %12 = sbr.rel (0) target = $region5
    $region4: #{tpu_custom_call.1} parent=1 // pred_region
      %s14 = ssub.s32 256, 256
      %15 = vsyncadd [#allocation3], %s14
      %s16 = sshll.u32 [#allocation2], 4
      %s17 = int_to_ptr.vmem [resolvable:$true] %s16
      %22 = dma.hbm_to_vmem [thread:$0]  %s0, 256, %s17, [#allocation3], 128, 128, 8
    $region5: #{tpu_custom_call.1} parent=1 // pred_fallthru
      _
    // Predicated region
    $region6: #{tpu_custom_call.1} parent=1 // pred_check
      _
    $region7: #{tpu_custom_call.1} parent=1 // pred_check_branch
      %24 = sbr.rel (0) target = $region9
    $region8: #{tpu_custom_call.1} parent=1 // pred_region
      %s26 = ssub.s32 2048, 2048
      %27 = vsyncadd [#allocation6], %s26
      %s28 = sshll.u32 [#allocation5], 4
      %s29 = int_to_ptr.vmem [resolvable:$true] %s28
      %34 = dma.hbm_to_vmem [thread:$0]  %s1, 2048, %s29, [#allocation6], 128, 128, 8
    $region9: #{tpu_custom_call.1} parent=1 // pred_fallthru
      _
    // Predicated region
    $region10: #{tpu_custom_call.1} parent=1 // pred_check
      _
    $region11: #{tpu_custom_call.1} parent=1 // pred_check_branch
      %36 = sbr.rel (0) target = $region13
    $region12: #{tpu_custom_call.1} parent=1 // pred_region
      _
    $region13: #{tpu_custom_call.1} parent=1 // pred_fallthru
      _
    // Predicated region
    $region14: #{tpu_custom_call.1} parent=1 // pred_check
      _
    $region15: #{tpu_custom_call.1} parent=1 // pred_check_branch
      %38 = sbr.rel (0) target = $region17
    $region16: #{tpu_custom_call.1} parent=1 // pred_region
      %39 = dma.done [#allocation3], 256
    $region17: #{tpu_custom_call.1} parent=1 // pred_fallthru
      _
    // Predicated region
    $region18: #{tpu_custom_call.1} parent=1 // pred_check
      _
    $region19: #{tpu_custom_call.1} parent=1 // pred_check_branch
      %41 = sbr.rel (0) target = $region21
    $region20: #{tpu_custom_call.1} parent=1 // pred_region
      %42 = dma.done [#allocation6], 2048
    $region21: #{tpu_custom_call.1} parent=1 // pred_fallthru
      _
    %p43 = scmp.eq.s32.totalorder 0, 0
    // Predicated region
    $region22: #{tpu_custom_call.1} parent=1 // pred_check
      %p44 = pneg %p43
    $region23: #{tpu_custom_call.1} parent=1 // pred_check_branch
      %46 = sbr.rel (%p44) target = $region25
    $region24: #{tpu_custom_call.1} parent=1 // pred_region
      %v47 = vld [vmem:[%s2] sm:$0x1]
      %v49 = vlaneseq
      %v50 = vshrl.u32 %v49, 7
      %v51 = vsub.s32 0, %v50
      %v52 = vrot.slane %v47, %v51
      %54 = vst [vmem:[#allocation7] sm:$0xff] %v52
      %55 = vst [vmem:[#allocation7 + $0x8] sm:$0xff] %v52
    $region25: #{tpu_custom_call.1} parent=1 // pred_fallthru
      _
    %v56 = vld [vmem:[#allocation2] sm:$0xff]
    %v57 = vld [vmem:[#allocation2 + $0x8] sm:$0xff]
    %v58 = vld [vmem:[#allocation5] sm:$0xff]
    %v59 = vld [vmem:[#allocation5 + $0x8] sm:$0xff]
    %v60 = vld [vmem:[#allocation5 + $0x10] sm:$0xff]
    %v61 = vld [vmem:[#allocation5 + $0x18] sm:$0xff]
    %v62 = vld [vmem:[#allocation5 + $0x20] sm:$0xff]
    %v63 = vld [vmem:[#allocation5 + $0x28] sm:$0xff]
    %v64 = vld [vmem:[#allocation5 + $0x30] sm:$0xff]
    %v65 = vld [vmem:[#allocation5 + $0x38] sm:$0xff]
    %v66 = vld [vmem:[#allocation5 + $0x40] sm:$0xff]
    %v67 = vld [vmem:[#allocation5 + $0x48] sm:$0xff]
    %v68 = vld [vmem:[#allocation5 + $0x50] sm:$0xff]
    %v69 = vld [vmem:[#allocation5 + $0x58] sm:$0xff]
    %v70 = vld [vmem:[#allocation5 + $0x60] sm:$0xff]
    %v71 = vld [vmem:[#allocation5 + $0x68] sm:$0xff]
    %v72 = vld [vmem:[#allocation5 + $0x70] sm:$0xff]
    %v73 = vld [vmem:[#allocation5 + $0x78] sm:$0xff]
    %v74 = vld [vmem:[#allocation7] sm:$0xff]
    %v75 = vld [vmem:[#allocation7 + $0x8] sm:$0xff]
    %76 = vmatprep.subr.mxu0 0.0
    %v77 = vand.u32 %v73, 4294901760
    %78 = vmatpush1.msra.mxu0 %v77
    %79 = vmatprep.subr.mxu0 0.0
    %v80 = vand.u32 %v72, 4294901760
    %81 = vmatpush1.msra.mxu0 %v80
    %82 = vmatprep.subr.mxu0 0.0
    %v83 = vand.u32 %v71, 4294901760
    %84 = vmatpush1.msra.mxu0 %v83
    %85 = vmatprep.subr.mxu0 0.0
    %v86 = vand.u32 %v70, 4294901760
    %87 = vmatpush1.msra.mxu0 %v86
    %88 = vmatprep.subr.mxu0 0.0
    %v89 = vand.u32 %v69, 4294901760
    %90 = vmatpush1.msra.mxu0 %v89
    %91 = vmatprep.subr.mxu0 0.0
    %v92 = vand.u32 %v68, 4294901760
    %93 = vmatpush1.msra.mxu0 %v92
    %94 = vmatprep.subr.mxu0 0.0
    %v95 = vand.u32 %v67, 4294901760
    %96 = vmatpush1.msra.mxu0 %v95
    %97 = vmatprep.subr.mxu0 0.0
    %v98 = vand.u32 %v66, 4294901760
    %99 = vmatpush1.msra.mxu0 %v98
    %100 = vmatprep.subr.mxu0 0.0
    %v101 = vand.u32 %v65, 4294901760
    %102 = vmatpush1.msra.mxu0 %v101
    %103 = vmatprep.subr.mxu0 0.0
    %v104 = vand.u32 %v64, 4294901760
    %105 = vmatpush1.msra.mxu0 %v104
    %106 = vmatprep.subr.mxu0 0.0
    %v107 = vand.u32 %v63, 4294901760
    %108 = vmatpush1.msra.mxu0 %v107
    %109 = vmatprep.subr.mxu0 0.0
    %v110 = vand.u32 %v62, 4294901760
    %111 = vmatpush1.msra.mxu0 %v110
    %112 = vmatprep.subr.mxu0 0.0
    %v113 = vand.u32 %v61, 4294901760
    %114 = vmatpush1.msra.mxu0 %v113
    %115 = vmatprep.subr.mxu0 0.0
    %v116 = vand.u32 %v60, 4294901760
    %117 = vmatpush1.msra.mxu0 %v116
    %118 = vmatprep.subr.mxu0 0.0
    %v119 = vand.u32 %v59, 4294901760
    %120 = vmatpush1.msra.mxu0 %v119
    %121 = vmatprep.subr.mxu0 0.0
    %v122 = vand.u32 %v58, 4294901760
    %123 = vmatpush1.msra.mxu0 %v122
    %124 = vmatprep.subr.mxu0 0.0
    %125 = vmatpush2.msra.mxu0 0.0
    %126 = vmatprep.subr.mxu0 0.0
    %127 = vmatpush2.msra.mxu0 0.0
    %128 = vmatprep.subr.mxu0 0.0
    %129 = vmatpush2.msra.mxu0 0.0
    %130 = vmatprep.subr.mxu0 0.0
    %131 = vmatpush2.msra.mxu0 0.0
    %132 = vmatprep.subr.mxu0 0.0
    %133 = vmatpush2.msra.mxu0 0.0
    %134 = vmatprep.subr.mxu0 0.0
    %135 = vmatpush2.msra.mxu0 0.0
    %136 = vmatprep.subr.mxu0 0.0
    %137 = vmatpush2.msra.mxu0 0.0
    %138 = vmatprep.subr.mxu0 0.0
    %139 = vmatpush2.msra.mxu0 0.0
    %140 = vmatprep.subr.mxu0 0.0
    %141 = vmatpush2.msra.mxu0 0.0
    %142 = vmatprep.subr.mxu0 0.0
    %143 = vmatpush2.msra.mxu0 0.0
    %144 = vmatprep.subr.mxu0 0.0
    %145 = vmatpush2.msra.mxu0 0.0
    %146 = vmatprep.subr.mxu0 0.0
    %147 = vmatpush2.msra.mxu0 0.0
    %148 = vmatprep.subr.mxu0 0.0
    %149 = vmatpush2.msra.mxu0 0.0
    %150 = vmatprep.subr.mxu0 0.0
    %151 = vmatpush2.msra.mxu0 0.0
    %152 = vmatprep.subr.mxu0 0.0
    %153 = vmatpush2.msra.mxu0 0.0
    %154 = vmatprep.subr.mxu0 0.0
    %155 = vmatpush2.msra.mxu0 0.0
    %156 = vmatprep.mubr.f32.mxu0 0.0
    %v157 = vand.u32 %v56, 4294901760
    %v158 = vsub.f32 %v56, %v157
    %v159 = vand.u32 %v158, 4294901760
    %v160 = vsub.f32 %v158, %v159
    %v161 = vand.u32 %v160, 4294901760
    %162 = vmatmul.mubr.f32.gmra.mxu0 %v161
    %v163 = vpop.f32.mrf.mxu0
    %v164 = vadd.f32 0.0, %v163
    %v165 = vpop.f32.mrf.mxu0
    %166 = vmatprep.mubr.f32.mxu0 0.0
    %v167 = vand.u32 %v57, 4294901760
    %v168 = vsub.f32 %v57, %v167
    %v169 = vand.u32 %v168, 4294901760
    %v170 = vsub.f32 %v168, %v169
    %v171 = vand.u32 %v170, 4294901760
    %172 = vmatmul.mubr.f32.gmra.mxu0 %v171
    %v173 = vpop.f32.mrf.mxu0
    %v174 = vadd.f32 0.0, %v173
    %v175 = vpop.f32.mrf.mxu0
    %176 = vdwg.mxu0
    %177 = vmatprep.subr.mxu0 0.0
    %v178 = vand.u32 %v73, 4294901760
    %v179 = vsub.f32 %v73, %v178
    %v180 = vand.u32 %v179, 4294901760
    %v181 = vsub.f32 %v179, %v180
    %v182 = vand.u32 %v181, 4294901760
    %183 = vmatpush1.msra.mxu0 %v182
    %184 = vmatprep.subr.mxu0 0.0
    %v185 = vand.u32 %v72, 4294901760
    %v186 = vsub.f32 %v72, %v185
    %v187 = vand.u32 %v186, 4294901760
    %v188 = vsub.f32 %v186, %v187
    %v189 = vand.u32 %v188, 4294901760
    %190 = vmatpush1.msra.mxu0 %v189
    %191 = vmatprep.subr.mxu0 0.0
    %v192 = vand.u32 %v71, 4294901760
    %v193 = vsub.f32 %v71, %v192
    %v194 = vand.u32 %v193, 4294901760
    %v195 = vsub.f32 %v193, %v194
    %v196 = vand.u32 %v195, 4294901760
    %197 = vmatpush1.msra.mxu0 %v196
    %198 = vmatprep.subr.mxu0 0.0
    %v199 = vand.u32 %v70, 4294901760
    %v200 = vsub.f32 %v70, %v199
    %v201 = vand.u32 %v200, 4294901760
    %v202 = vsub.f32 %v200, %v201
    %v203 = vand.u32 %v202, 4294901760
    %204 = vmatpush1.msra.mxu0 %v203
    %205 = vmatprep.subr.mxu0 0.0
    %v206 = vand.u32 %v69, 4294901760
    %v207 = vsub.f32 %v69, %v206
    %v208 = vand.u32 %v207, 4294901760
    %v209 = vsub.f32 %v207, %v208
    %v210 = vand.u32 %v209, 4294901760
    %211 = vmatpush1.msra.mxu0 %v210
    %212 = vmatprep.subr.mxu0 0.0
    %v213 = vand.u32 %v68, 4294901760
    %v214 = vsub.f32 %v68, %v213
    %v215 = vand.u32 %v214, 4294901760
    %v216 = vsub.f32 %v214, %v215
    %v217 = vand.u32 %v216, 4294901760
    %218 = vmatpush1.msra.mxu0 %v217
    %219 = vmatprep.subr.mxu0 0.0
    %v220 = vand.u32 %v67, 4294901760
    %v221 = vsub.f32 %v67, %v220
    %v222 = vand.u32 %v221, 4294901760
    %v223 = vsub.f32 %v221, %v222
    %v224 = vand.u32 %v223, 4294901760
    %225 = vmatpush1.msra.mxu0 %v224
    %226 = vmatprep.subr.mxu0 0.0
    %v227 = vand.u32 %v66, 4294901760
    %v228 = vsub.f32 %v66, %v227
    %v229 = vand.u32 %v228, 4294901760
    %v230 = vsub.f32 %v228, %v229
    %v231 = vand.u32 %v230, 4294901760
    %232 = vmatpush1.msra.mxu0 %v231
    %233 = vmatprep.subr.mxu0 0.0
    %v234 = vand.u32 %v65, 4294901760
    %v235 = vsub.f32 %v65, %v234
    %v236 = vand.u32 %v235, 4294901760
    %v237 = vsub.f32 %v235, %v236
    %v238 = vand.u32 %v237, 4294901760
    %239 = vmatpush1.msra.mxu0 %v238
    %240 = vmatprep.subr.mxu0 0.0
    %v241 = vand.u32 %v64, 4294901760
    %v242 = vsub.f32 %v64, %v241
    %v243 = vand.u32 %v242, 4294901760
    %v244 = vsub.f32 %v242, %v243
    %v245 = vand.u32 %v244, 4294901760
    %246 = vmatpush1.msra.mxu0 %v245
    %247 = vmatprep.subr.mxu0 0.0
    %v248 = vand.u32 %v63, 4294901760
    %v249 = vsub.f32 %v63, %v248
    %v250 = vand.u32 %v249, 4294901760
    %v251 = vsub.f32 %v249, %v250
    %v252 = vand.u32 %v251, 4294901760
    %253 = vmatpush1.msra.mxu0 %v252
    %254 = vmatprep.subr.mxu0 0.0
    %v255 = vand.u32 %v62, 4294901760
    %v256 = vsub.f32 %v62, %v255
    %v257 = vand.u32 %v256, 4294901760
    %v258 = vsub.f32 %v256, %v257
    %v259 = vand.u32 %v258, 4294901760
    %260 = vmatpush1.msra.mxu0 %v259
    %261 = vmatprep.subr.mxu0 0.0
    %v262 = vand.u32 %v61, 4294901760
    %v263 = vsub.f32 %v61, %v262
    %v264 = vand.u32 %v263, 4294901760
    %v265 = vsub.f32 %v263, %v264
    %v266 = vand.u32 %v265, 4294901760
    %267 = vmatpush1.msra.mxu0 %v266
    %268 = vmatprep.subr.mxu0 0.0
    %v269 = vand.u32 %v60, 4294901760
    %v270 = vsub.f32 %v60, %v269
    %v271 = vand.u32 %v270, 4294901760
    %v272 = vsub.f32 %v270, %v271
    %v273 = vand.u32 %v272, 4294901760
    %274 = vmatpush1.msra.mxu0 %v273
    %275 = vmatprep.subr.mxu0 0.0
    %v276 = vand.u32 %v59, 4294901760
    %v277 = vsub.f32 %v59, %v276
    %v278 = vand.u32 %v277, 4294901760
    %v279 = vsub.f32 %v277, %v278
    %v280 = vand.u32 %v279, 4294901760
    %281 = vmatpush1.msra.mxu0 %v280
    %282 = vmatprep.subr.mxu0 0.0
    %v283 = vand.u32 %v58, 4294901760
    %v284 = vsub.f32 %v58, %v283
    %v285 = vand.u32 %v284, 4294901760
    %v286 = vsub.f32 %v284, %v285
    %v287 = vand.u32 %v286, 4294901760
    %288 = vmatpush1.msra.mxu0 %v287
    %289 = vmatprep.subr.mxu0 0.0
    %290 = vmatpush2.msra.mxu0 0.0
    %291 = vmatprep.subr.mxu0 0.0
    %292 = vmatpush2.msra.mxu0 0.0
    %293 = vmatprep.subr.mxu0 0.0
    %294 = vmatpush2.msra.mxu0 0.0
    %295 = vmatprep.subr.mxu0 0.0
    %296 = vmatpush2.msra.mxu0 0.0
    %297 = vmatprep.subr.mxu0 0.0
    %298 = vmatpush2.msra.mxu0 0.0
    %299 = vmatprep.subr.mxu0 0.0
    %300 = vmatpush2.msra.mxu0 0.0
    %301 = vmatprep.subr.mxu0 0.0
    %302 = vmatpush2.msra.mxu0 0.0
    %303 = vmatprep.subr.mxu0 0.0
    %304 = vmatpush2.msra.mxu0 0.0
    %305 = vmatprep.subr.mxu0 0.0
    %306 = vmatpush2.msra.mxu0 0.0
    %307 = vmatprep.subr.mxu0 0.0
    %308 = vmatpush2.msra.mxu0 0.0
    %309 = vmatprep.subr.mxu0 0.0
    %310 = vmatpush2.msra.mxu0 0.0
    %311 = vmatprep.subr.mxu0 0.0
    %312 = vmatpush2.msra.mxu0 0.0
    %313 = vmatprep.subr.mxu0 0.0
    %314 = vmatpush2.msra.mxu0 0.0
    %315 = vmatprep.subr.mxu0 0.0
    %316 = vmatpush2.msra.mxu0 0.0
    %317 = vmatprep.subr.mxu0 0.0
    %318 = vmatpush2.msra.mxu0 0.0
    %319 = vmatprep.subr.mxu0 0.0
    %320 = vmatpush2.msra.mxu0 0.0
    %321 = vmatprep.mubr.f32.mxu0 0.0
    %v322 = vand.u32 %v56, 4294901760
    %323 = vmatmul.mubr.f32.gmra.mxu0 %v322
    %v324 = vpop.f32.mrf.mxu0
    %v325 = vadd.f32 %v164, %v324
    %v326 = vpop.f32.mrf.mxu0
    %327 = vmatprep.mubr.f32.mxu0 0.0
    %v328 = vand.u32 %v57, 4294901760
    %329 = vmatmul.mubr.f32.gmra.mxu0 %v328
    %v330 = vpop.f32.mrf.mxu0
    %v331 = vadd.f32 %v174, %v330
    %v332 = vpop.f32.mrf.mxu0
    %333 = vdwg.mxu0
    %334 = vmatprep.subr.mxu0 0.0
    %v335 = vand.u32 %v73, 4294901760
    %v336 = vsub.f32 %v73, %v335
    %337 = vmatpush1.msra.mxu0 %v336
    %338 = vmatprep.subr.mxu0 0.0
    %v339 = vand.u32 %v72, 4294901760
    %v340 = vsub.f32 %v72, %v339
    %341 = vmatpush1.msra.mxu0 %v340
    %342 = vmatprep.subr.mxu0 0.0
    %v343 = vand.u32 %v71, 4294901760
    %v344 = vsub.f32 %v71, %v343
    %345 = vmatpush1.msra.mxu0 %v344
    %346 = vmatprep.subr.mxu0 0.0
    %v347 = vand.u32 %v70, 4294901760
    %v348 = vsub.f32 %v70, %v347
    %349 = vmatpush1.msra.mxu0 %v348
    %350 = vmatprep.subr.mxu0 0.0
    %v351 = vand.u32 %v69, 4294901760
    %v352 = vsub.f32 %v69, %v351
    %353 = vmatpush1.msra.mxu0 %v352
    %354 = vmatprep.subr.mxu0 0.0
    %v355 = vand.u32 %v68, 4294901760
    %v356 = vsub.f32 %v68, %v355
    %357 = vmatpush1.msra.mxu0 %v356
    %358 = vmatprep.subr.mxu0 0.0
    %v359 = vand.u32 %v67, 4294901760
    %v360 = vsub.f32 %v67, %v359
    %361 = vmatpush1.msra.mxu0 %v360
    %362 = vmatprep.subr.mxu0 0.0
    %v363 = vand.u32 %v66, 4294901760
    %v364 = vsub.f32 %v66, %v363
    %365 = vmatpush1.msra.mxu0 %v364
    %366 = vmatprep.subr.mxu0 0.0
    %v367 = vand.u32 %v65, 4294901760
    %v368 = vsub.f32 %v65, %v367
    %369 = vmatpush1.msra.mxu0 %v368
    %370 = vmatprep.subr.mxu0 0.0
    %v371 = vand.u32 %v64, 4294901760
    %v372 = vsub.f32 %v64, %v371
    %373 = vmatpush1.msra.mxu0 %v372
    %374 = vmatprep.subr.mxu0 0.0
    %v375 = vand.u32 %v63, 4294901760
    %v376 = vsub.f32 %v63, %v375
    %377 = vmatpush1.msra.mxu0 %v376
    %378 = vmatprep.subr.mxu0 0.0
    %v379 = vand.u32 %v62, 4294901760
    %v380 = vsub.f32 %v62, %v379
    %381 = vmatpush1.msra.mxu0 %v380
    %382 = vmatprep.subr.mxu0 0.0
    %v383 = vand.u32 %v61, 4294901760
    %v384 = vsub.f32 %v61, %v383
    %385 = vmatpush1.msra.mxu0 %v384
    %386 = vmatprep.subr.mxu0 0.0
    %v387 = vand.u32 %v60, 4294901760
    %v388 = vsub.f32 %v60, %v387
    %389 = vmatpush1.msra.mxu0 %v388
    %390 = vmatprep.subr.mxu0 0.0
    %v391 = vand.u32 %v59, 4294901760
    %v392 = vsub.f32 %v59, %v391
    %393 = vmatpush1.msra.mxu0 %v392
    %394 = vmatprep.subr.mxu0 0.0
    %v395 = vand.u32 %v58, 4294901760
    %v396 = vsub.f32 %v58, %v395
    %397 = vmatpush1.msra.mxu0 %v396
    %398 = vmatprep.subr.mxu0 0.0
    %399 = vmatpush2.msra.mxu0 0.0
    %400 = vmatprep.subr.mxu0 0.0
    %401 = vmatpush2.msra.mxu0 0.0
    %402 = vmatprep.subr.mxu0 0.0
    %403 = vmatpush2.msra.mxu0 0.0
    %404 = vmatprep.subr.mxu0 0.0
    %405 = vmatpush2.msra.mxu0 0.0
    %406 = vmatprep.subr.mxu0 0.0
    %407 = vmatpush2.msra.mxu0 0.0
    %408 = vmatprep.subr.mxu0 0.0
    %409 = vmatpush2.msra.mxu0 0.0
    %410 = vmatprep.subr.mxu0 0.0
    %411 = vmatpush2.msra.mxu0 0.0
    %412 = vmatprep.subr.mxu0 0.0
    %413 = vmatpush2.msra.mxu0 0.0
    %414 = vmatprep.subr.mxu0 0.0
    %415 = vmatpush2.msra.mxu0 0.0
    %416 = vmatprep.subr.mxu0 0.0
    %417 = vmatpush2.msra.mxu0 0.0
    %418 = vmatprep.subr.mxu0 0.0
    %419 = vmatpush2.msra.mxu0 0.0
    %420 = vmatprep.subr.mxu0 0.0
    %421 = vmatpush2.msra.mxu0 0.0
    %422 = vmatprep.subr.mxu0 0.0
    %423 = vmatpush2.msra.mxu0 0.0
    %424 = vmatprep.subr.mxu0 0.0
    %425 = vmatpush2.msra.mxu0 0.0
    %426 = vmatprep.subr.mxu0 0.0
    %427 = vmatpush2.msra.mxu0 0.0
    %428 = vmatprep.subr.mxu0 0.0
    %429 = vmatpush2.msra.mxu0 0.0
    %430 = vmatprep.mubr.f32.mxu0 0.0
    %v431 = vand.u32 %v56, 4294901760
    %v432 = vsub.f32 %v56, %v431
    %433 = vmatmul.mubr.f32.gmra.mxu0 %v432
    %v434 = vpop.f32.mrf.mxu0
    %v435 = vadd.f32 %v325, %v434
    %v436 = vpop.f32.mrf.mxu0
    %437 = vmatprep.mubr.f32.mxu0 0.0
    %v438 = vand.u32 %v57, 4294901760
    %v439 = vsub.f32 %v57, %v438
    %440 = vmatmul.mubr.f32.gmra.mxu0 %v439
    %v441 = vpop.f32.mrf.mxu0
    %v442 = vadd.f32 %v331, %v441
    %v443 = vpop.f32.mrf.mxu0
    %444 = vdwg.mxu0
    %445 = vmatprep.subr.mxu0 0.0
    %v446 = vand.u32 %v73, 4294901760
    %447 = vmatpush1.msra.mxu0 %v446
    %448 = vmatprep.subr.mxu0 0.0
    %v449 = vand.u32 %v72, 4294901760
    %450 = vmatpush1.msra.mxu0 %v449
    %451 = vmatprep.subr.mxu0 0.0
    %v452 = vand.u32 %v71, 4294901760
    %453 = vmatpush1.msra.mxu0 %v452
    %454 = vmatprep.subr.mxu0 0.0
    %v455 = vand.u32 %v70, 4294901760
    %456 = vmatpush1.msra.mxu0 %v455
    %457 = vmatprep.subr.mxu0 0.0
    %v458 = vand.u32 %v69, 4294901760
    %459 = vmatpush1.msra.mxu0 %v458
    %460 = vmatprep.subr.mxu0 0.0
    %v461 = vand.u32 %v68, 4294901760
    %462 = vmatpush1.msra.mxu0 %v461
    %463 = vmatprep.subr.mxu0 0.0
    %v464 = vand.u32 %v67, 4294901760
    %465 = vmatpush1.msra.mxu0 %v464
    %466 = vmatprep.subr.mxu0 0.0
    %v467 = vand.u32 %v66, 4294901760
    %468 = vmatpush1.msra.mxu0 %v467
    %469 = vmatprep.subr.mxu0 0.0
    %v470 = vand.u32 %v65, 4294901760
    %471 = vmatpush1.msra.mxu0 %v470
    %472 = vmatprep.subr.mxu0 0.0
    %v473 = vand.u32 %v64, 4294901760
    %474 = vmatpush1.msra.mxu0 %v473
    %475 = vmatprep.subr.mxu0 0.0
    %v476 = vand.u32 %v63, 4294901760
    %477 = vmatpush1.msra.mxu0 %v476
    %478 = vmatprep.subr.mxu0 0.0
    %v479 = vand.u32 %v62, 4294901760
    %480 = vmatpush1.msra.mxu0 %v479
    %481 = vmatprep.subr.mxu0 0.0
    %v482 = vand.u32 %v61, 4294901760
    %483 = vmatpush1.msra.mxu0 %v482
    %484 = vmatprep.subr.mxu0 0.0
    %v485 = vand.u32 %v60, 4294901760
    %486 = vmatpush1.msra.mxu0 %v485
    %487 = vmatprep.subr.mxu0 0.0
    %v488 = vand.u32 %v59, 4294901760
    %489 = vmatpush1.msra.mxu0 %v488
    %490 = vmatprep.subr.mxu0 0.0
    %v491 = vand.u32 %v58, 4294901760
    %492 = vmatpush1.msra.mxu0 %v491
    %493 = vmatprep.subr.mxu0 0.0
    %494 = vmatpush2.msra.mxu0 0.0
    %495 = vmatprep.subr.mxu0 0.0
    %496 = vmatpush2.msra.mxu0 0.0
    %497 = vmatprep.subr.mxu0 0.0
    %498 = vmatpush2.msra.mxu0 0.0
    %499 = vmatprep.subr.mxu0 0.0
    %500 = vmatpush2.msra.mxu0 0.0
    %501 = vmatprep.subr.mxu0 0.0
    %502 = vmatpush2.msra.mxu0 0.0
    %503 = vmatprep.subr.mxu0 0.0
    %504 = vmatpush2.msra.mxu0 0.0
    %505 = vmatprep.subr.mxu0 0.0
    %506 = vmatpush2.msra.mxu0 0.0
    %507 = vmatprep.subr.mxu0 0.0
    %508 = vmatpush2.msra.mxu0 0.0
    %509 = vmatprep.subr.mxu0 0.0
    %510 = vmatpush2.msra.mxu0 0.0
    %511 = vmatprep.subr.mxu0 0.0
    %512 = vmatpush2.msra.mxu0 0.0
    %513 = vmatprep.subr.mxu0 0.0
    %514 = vmatpush2.msra.mxu0 0.0
    %515 = vmatprep.subr.mxu0 0.0
    %516 = vmatpush2.msra.mxu0 0.0
    %517 = vmatprep.subr.mxu0 0.0
    %518 = vmatpush2.msra.mxu0 0.0
    %519 = vmatprep.subr.mxu0 0.0
    %520 = vmatpush2.msra.mxu0 0.0
    %521 = vmatprep.subr.mxu0 0.0
    %522 = vmatpush2.msra.mxu0 0.0
    %523 = vmatprep.subr.mxu0 0.0
    %524 = vmatpush2.msra.mxu0 0.0
    %525 = vmatprep.mubr.f32.mxu0 0.0
    %v526 = vand.u32 %v56, 4294901760
    %v527 = vsub.f32 %v56, %v526
    %v528 = vand.u32 %v527, 4294901760
    %529 = vmatmul.mubr.f32.gmra.mxu0 %v528
    %v530 = vpop.f32.mrf.mxu0
    %v531 = vadd.f32 %v435, %v530
    %v532 = vpop.f32.mrf.mxu0
    %533 = vmatprep.mubr.f32.mxu0 0.0
    %v534 = vand.u32 %v57, 4294901760
    %v535 = vsub.f32 %v57, %v534
    %v536 = vand.u32 %v535, 4294901760
    %537 = vmatmul.mubr.f32.gmra.mxu0 %v536
    %v538 = vpop.f32.mrf.mxu0
    %v539 = vadd.f32 %v442, %v538
    %v540 = vpop.f32.mrf.mxu0
    %541 = vdwg.mxu0
    %542 = vmatprep.subr.mxu0 0.0
    %v543 = vand.u32 %v73, 4294901760
    %v544 = vsub.f32 %v73, %v543
    %v545 = vand.u32 %v544, 4294901760
    %546 = vmatpush1.msra.mxu0 %v545
    %547 = vmatprep.subr.mxu0 0.0
    %v548 = vand.u32 %v72, 4294901760
    %v549 = vsub.f32 %v72, %v548
    %v550 = vand.u32 %v549, 4294901760
    %551 = vmatpush1.msra.mxu0 %v550
    %552 = vmatprep.subr.mxu0 0.0
    %v553 = vand.u32 %v71, 4294901760
    %v554 = vsub.f32 %v71, %v553
    %v555 = vand.u32 %v554, 4294901760
    %556 = vmatpush1.msra.mxu0 %v555
    %557 = vmatprep.subr.mxu0 0.0
    %v558 = vand.u32 %v70, 4294901760
    %v559 = vsub.f32 %v70, %v558
    %v560 = vand.u32 %v559, 4294901760
    %561 = vmatpush1.msra.mxu0 %v560
    %562 = vmatprep.subr.mxu0 0.0
    %v563 = vand.u32 %v69, 4294901760
    %v564 = vsub.f32 %v69, %v563
    %v565 = vand.u32 %v564, 4294901760
    %566 = vmatpush1.msra.mxu0 %v565
    %567 = vmatprep.subr.mxu0 0.0
    %v568 = vand.u32 %v68, 4294901760
    %v569 = vsub.f32 %v68, %v568
    %v570 = vand.u32 %v569, 4294901760
    %571 = vmatpush1.msra.mxu0 %v570
    %572 = vmatprep.subr.mxu0 0.0
    %v573 = vand.u32 %v67, 4294901760
    %v574 = vsub.f32 %v67, %v573
    %v575 = vand.u32 %v574, 4294901760
    %576 = vmatpush1.msra.mxu0 %v575
    %577 = vmatprep.subr.mxu0 0.0
    %v578 = vand.u32 %v66, 4294901760
    %v579 = vsub.f32 %v66, %v578
    %v580 = vand.u32 %v579, 4294901760
    %581 = vmatpush1.msra.mxu0 %v580
    %582 = vmatprep.subr.mxu0 0.0
    %v583 = vand.u32 %v65, 4294901760
    %v584 = vsub.f32 %v65, %v583
    %v585 = vand.u32 %v584, 4294901760
    %586 = vmatpush1.msra.mxu0 %v585
    %587 = vmatprep.subr.mxu0 0.0
    %v588 = vand.u32 %v64, 4294901760
    %v589 = vsub.f32 %v64, %v588
    %v590 = vand.u32 %v589, 4294901760
    %591 = vmatpush1.msra.mxu0 %v590
    %592 = vmatprep.subr.mxu0 0.0
    %v593 = vand.u32 %v63, 4294901760
    %v594 = vsub.f32 %v63, %v593
    %v595 = vand.u32 %v594, 4294901760
    %596 = vmatpush1.msra.mxu0 %v595
    %597 = vmatprep.subr.mxu0 0.0
    %v598 = vand.u32 %v62, 4294901760
    %v599 = vsub.f32 %v62, %v598
    %v600 = vand.u32 %v599, 4294901760
    %601 = vmatpush1.msra.mxu0 %v600
    %602 = vmatprep.subr.mxu0 0.0
    %v603 = vand.u32 %v61, 4294901760
    %v604 = vsub.f32 %v61, %v603
    %v605 = vand.u32 %v604, 4294901760
    %606 = vmatpush1.msra.mxu0 %v605
    %607 = vmatprep.subr.mxu0 0.0
    %v608 = vand.u32 %v60, 4294901760
    %v609 = vsub.f32 %v60, %v608
    %v610 = vand.u32 %v609, 4294901760
    %611 = vmatpush1.msra.mxu0 %v610
    %612 = vmatprep.subr.mxu0 0.0
    %v613 = vand.u32 %v59, 4294901760
    %v614 = vsub.f32 %v59, %v613
    %v615 = vand.u32 %v614, 4294901760
    %616 = vmatpush1.msra.mxu0 %v615
    %617 = vmatprep.subr.mxu0 0.0
    %v618 = vand.u32 %v58, 4294901760
    %v619 = vsub.f32 %v58, %v618
    %v620 = vand.u32 %v619, 4294901760
    %621 = vmatpush1.msra.mxu0 %v620
    %622 = vmatprep.subr.mxu0 0.0
    %623 = vmatpush2.msra.mxu0 0.0
    %624 = vmatprep.subr.mxu0 0.0
    %625 = vmatpush2.msra.mxu0 0.0
    %626 = vmatprep.subr.mxu0 0.0
    %627 = vmatpush2.msra.mxu0 0.0
    %628 = vmatprep.subr.mxu0 0.0
    %629 = vmatpush2.msra.mxu0 0.0
    %630 = vmatprep.subr.mxu0 0.0
    %631 = vmatpush2.msra.mxu0 0.0
    %632 = vmatprep.subr.mxu0 0.0
    %633 = vmatpush2.msra.mxu0 0.0
    %634 = vmatprep.subr.mxu0 0.0
    %635 = vmatpush2.msra.mxu0 0.0
    %636 = vmatprep.subr.mxu0 0.0
    %637 = vmatpush2.msra.mxu0 0.0
    %638 = vmatprep.subr.mxu0 0.0
    %639 = vmatpush2.msra.mxu0 0.0
    %640 = vmatprep.subr.mxu0 0.0
    %641 = vmatpush2.msra.mxu0 0.0
    %642 = vmatprep.subr.mxu0 0.0
    %643 = vmatpush2.msra.mxu0 0.0
    %644 = vmatprep.subr.mxu0 0.0
    %645 = vmatpush2.msra.mxu0 0.0
    %646 = vmatprep.subr.mxu0 0.0
    %647 = vmatpush2.msra.mxu0 0.0
    %648 = vmatprep.subr.mxu0 0.0
    %649 = vmatpush2.msra.mxu0 0.0
    %650 = vmatprep.subr.mxu0 0.0
    %651 = vmatpush2.msra.mxu0 0.0
    %652 = vmatprep.subr.mxu0 0.0
    %653 = vmatpush2.msra.mxu0 0.0
    %654 = vmatprep.mubr.f32.mxu0 0.0
    %v655 = vand.u32 %v56, 4294901760
    %656 = vmatmul.mubr.f32.gmra.mxu0 %v655
    %v657 = vpop.f32.mrf.mxu0
    %v658 = vadd.f32 %v531, %v657
    %v659 = vpop.f32.mrf.mxu0
    %660 = vmatprep.mubr.f32.mxu0 0.0
    %v661 = vand.u32 %v57, 4294901760
    %662 = vmatmul.mubr.f32.gmra.mxu0 %v661
    %v663 = vpop.f32.mrf.mxu0
    %v664 = vadd.f32 %v539, %v663
    %v665 = vpop.f32.mrf.mxu0
    %666 = vdwg.mxu0
    %667 = vmatprep.subr.mxu0 0.0
    %v668 = vand.u32 %v73, 4294901760
    %669 = vmatpush1.msra.mxu0 %v668
    %670 = vmatprep.subr.mxu0 0.0
    %v671 = vand.u32 %v72, 4294901760
    %672 = vmatpush1.msra.mxu0 %v671
    %673 = vmatprep.subr.mxu0 0.0
    %v674 = vand.u32 %v71, 4294901760
    %675 = vmatpush1.msra.mxu0 %v674
    %676 = vmatprep.subr.mxu0 0.0
    %v677 = vand.u32 %v70, 4294901760
    %678 = vmatpush1.msra.mxu0 %v677
    %679 = vmatprep.subr.mxu0 0.0
    %v680 = vand.u32 %v69, 4294901760
    %681 = vmatpush1.msra.mxu0 %v680
    %682 = vmatprep.subr.mxu0 0.0
    %v683 = vand.u32 %v68, 4294901760
    %684 = vmatpush1.msra.mxu0 %v683
    %685 = vmatprep.subr.mxu0 0.0
    %v686 = vand.u32 %v67, 4294901760
    %687 = vmatpush1.msra.mxu0 %v686
    %688 = vmatprep.subr.mxu0 0.0
    %v689 = vand.u32 %v66, 4294901760
    %690 = vmatpush1.msra.mxu0 %v689
    %691 = vmatprep.subr.mxu0 0.0
    %v692 = vand.u32 %v65, 4294901760
    %693 = vmatpush1.msra.mxu0 %v692
    %694 = vmatprep.subr.mxu0 0.0
    %v695 = vand.u32 %v64, 4294901760
    %696 = vmatpush1.msra.mxu0 %v695
    %697 = vmatprep.subr.mxu0 0.0
    %v698 = vand.u32 %v63, 4294901760
    %699 = vmatpush1.msra.mxu0 %v698
    %700 = vmatprep.subr.mxu0 0.0
    %v701 = vand.u32 %v62, 4294901760
    %702 = vmatpush1.msra.mxu0 %v701
    %703 = vmatprep.subr.mxu0 0.0
    %v704 = vand.u32 %v61, 4294901760
    %705 = vmatpush1.msra.mxu0 %v704
    %706 = vmatprep.subr.mxu0 0.0
    %v707 = vand.u32 %v60, 4294901760
    %708 = vmatpush1.msra.mxu0 %v707
    %709 = vmatprep.subr.mxu0 0.0
    %v710 = vand.u32 %v59, 4294901760
    %711 = vmatpush1.msra.mxu0 %v710
    %712 = vmatprep.subr.mxu0 0.0
    %v713 = vand.u32 %v58, 4294901760
    %714 = vmatpush1.msra.mxu0 %v713
    %715 = vmatprep.subr.mxu0 0.0
    %716 = vmatpush2.msra.mxu0 0.0
    %717 = vmatprep.subr.mxu0 0.0
    %718 = vmatpush2.msra.mxu0 0.0
    %719 = vmatprep.subr.mxu0 0.0
    %720 = vmatpush2.msra.mxu0 0.0
    %721 = vmatprep.subr.mxu0 0.0
    %722 = vmatpush2.msra.mxu0 0.0
    %723 = vmatprep.subr.mxu0 0.0
    %724 = vmatpush2.msra.mxu0 0.0
    %725 = vmatprep.subr.mxu0 0.0
    %726 = vmatpush2.msra.mxu0 0.0
    %727 = vmatprep.subr.mxu0 0.0
    %728 = vmatpush2.msra.mxu0 0.0
    %729 = vmatprep.subr.mxu0 0.0
    %730 = vmatpush2.msra.mxu0 0.0
    %731 = vmatprep.subr.mxu0 0.0
    %732 = vmatpush2.msra.mxu0 0.0
    %733 = vmatprep.subr.mxu0 0.0
    %734 = vmatpush2.msra.mxu0 0.0
    %735 = vmatprep.subr.mxu0 0.0
    %736 = vmatpush2.msra.mxu0 0.0
    %737 = vmatprep.subr.mxu0 0.0
    %738 = vmatpush2.msra.mxu0 0.0
    %739 = vmatprep.subr.mxu0 0.0
    %740 = vmatpush2.msra.mxu0 0.0
    %741 = vmatprep.subr.mxu0 0.0
    %742 = vmatpush2.msra.mxu0 0.0
    %743 = vmatprep.subr.mxu0 0.0
    %744 = vmatpush2.msra.mxu0 0.0
    %745 = vmatprep.subr.mxu0 0.0
    %746 = vmatpush2.msra.mxu0 0.0
    %747 = vmatprep.mubr.f32.mxu0 0.0
    %v748 = vand.u32 %v56, 4294901760
    %749 = vmatmul.mubr.f32.gmra.mxu0 %v748
    %v750 = vpop.f32.mrf.mxu0
    %v751 = vadd.f32 %v658, %v750
    %v752 = vpop.f32.mrf.mxu0
    %753 = vmatprep.mubr.f32.mxu0 0.0
    %v754 = vand.u32 %v57, 4294901760
    %755 = vmatmul.mubr.f32.gmra.mxu0 %v754
    %v756 = vpop.f32.mrf.mxu0
    %v757 = vadd.f32 %v664, %v756
    %v758 = vpop.f32.mrf.mxu0
    %759 = vdwg.mxu0
    %v760 = vadd.f32 %v74, %v751
    %v761 = vadd.f32 %v75, %v757
    %762 = vst [vmem:[#allocation7] sm:$0xff] %v760
    %763 = vst [vmem:[#allocation7 + $0x8] sm:$0xff] %v761
    // Predicated region
    $region26: #{tpu_custom_call.1} parent=1 // pred_check
      _
    $region27: #{tpu_custom_call.1} parent=1 // pred_check_branch
      %765 = sbr.rel (0) target = $region29
    $region28: #{tpu_custom_call.1} parent=1 // pred_region
      %s767 = ssub.s32 256, 256
      %768 = vsyncadd [#allocation4], %s767
      %s769 = sshll.u32 [#allocation7], 4
      %s770 = int_to_ptr.vmem [resolvable:$true] %s769
      %775 = dma.vmem_to_hbm [thread:$0]  %s770, 256, %s3, [#allocation4], 128, 128, 8
    $region29: #{tpu_custom_call.1} parent=1 // pred_fallthru
      _
    // Predicated region
    $region30: #{tpu_custom_call.1} parent=1 // pred_check
      _
    $region31: #{tpu_custom_call.1} parent=1 // pred_check_branch
      %777 = sbr.rel (0) target = $region33
    $region32: #{tpu_custom_call.1} parent=1 // pred_region
      %778 = dma.done [#allocation4], 256
    $region33: #{tpu_custom_call.1} parent=1 // pred_fallthru
      _
    %779 = vsyncpa [#allocation3], 1
    %780 = vsyncpa [#allocation6], 1
    %781 = vsyncpa [#allocation4], 1

</llo_original>
